<compile_context>
chip_gen: v5e
topology: v5e:2x2
jax: 0.10.0
libtpu: 0.0.40
codegen_flags: <defaults>
</compile_context>

<pallas_src>
import jax
import jax.numpy as jnp
from jax.experimental import pallas as pl
from jax.experimental.pallas import tpu as pltpu


def _affine_kernel(x_ref, w_ref, b_ref, o_ref):
    # x_ref / o_ref: (TN, 1) f32 in VMEM.  w_ref / b_ref: (1, 1) f32 in SMEM.
    # Pure VPU multiply-add; no MXU, no lane padding.
    o_ref[...] = x_ref[...] * w_ref[0, 0] + b_ref[0, 0]


def _round_up(v, m):
    return ((v + m - 1) // m) * m


@jax.jit
def linear_forward(x, weight, bias):
    """y = x @ weight.T + bias for in_features = out_features = 1.

    x:      (N, 1)  float32
    weight: (1, 1)  float32  (PyTorch nn.Linear convention)
    bias:   (1,)    float32
    """
    n, k = x.shape
    m = weight.shape[0]
    assert k == 1 and m == 1, "kernel is specialized to nn.Linear(1, 1)"

    # Row tiling: small N -> one full-array block (exempt from (8,128) rule
    # after rounding rows to 8); large N -> 1024-row tiles (4 KiB/buffer f32,
    # comfortably inside v7x's 64 MiB VMEM even with double-buffering).
    n_p8 = _round_up(max(n, 8), 8)
    if n_p8 <= 4096:
        tn = n_p8
        n_p = n_p8
    else:
        tn = 1024
        n_p = _round_up(n, tn)

    x_p = x if n_p == n else jnp.pad(x, ((0, n_p - n), (0, 0)))

    w_s = weight.reshape(1, 1).astype(jnp.float32)   # SMEM scalar
    b_s = bias.reshape(1, 1).astype(jnp.float32)     # SMEM scalar

    out_p = pl.pallas_call(
        _affine_kernel,
        out_shape=jax.ShapeDtypeStruct((n_p, 1), jnp.float32),
        grid=(n_p // tn,),
        in_specs=[
            pl.BlockSpec((tn, 1), lambda i: (i, 0)),
            pl.BlockSpec(memory_space=pltpu.MemorySpace.SMEM),
            pl.BlockSpec(memory_space=pltpu.MemorySpace.SMEM),
        ],
        out_specs=pl.BlockSpec((tn, 1), lambda i: (i, 0)),
        compiler_params=pltpu.CompilerParams(
            dimension_semantics=("parallel",)),
        cost_estimate=pl.CostEstimate(
            flops=2 * n, transcendentals=0, bytes_accessed=8 * n + 8),
    )(x_p, w_s, b_s)

    return out_p if n_p == n else out_p[:n]


if __name__ == "__main__":
    in_features = 1
    out_features = 1
    batch = 8

    key = jax.random.PRNGKey(0)
    kx, kw, kb = jax.random.split(key, 3)

    # Raw data, then x = x.reshape(-1, 1) as in the original script.
    x_raw = jax.random.normal(kx, (batch,), dtype=jnp.float32)
    x = x_raw.reshape(-1, 1)

    # Deterministic nn.Linear-style init: U(-1/sqrt(in), 1/sqrt(in)).
    bound = 1.0 / jnp.sqrt(jnp.float32(in_features))
    weight = jax.random.uniform(
        kw, (out_features, in_features), jnp.float32, -bound, bound
    )
    bias = jax.random.uniform(kb, (out_features,), jnp.float32, -bound, bound)

    y_pred = linear_forward(x, weight, bias)
    jax.block_until_ready(y_pred)

    # Reference check in plain JAX.
    y_ref = x @ weight.T + bias
    assert y_pred.shape == (batch, out_features)
    assert jnp.allclose(y_pred, y_ref, atol=1e-5, rtol=1e-5)

    print("KERNEL_OK")
</pallas_src>

<mosaic_0001>
module attributes {stable_mosaic.version = 11 : i64} {
  func.func @_affine_kernel(%arg0: i32, %arg1: memref<8x1xf32, #tpu.memory_space<vmem>>, %arg2: memref<1x1xf32, #tpu.memory_space<smem>>, %arg3: memref<1x1xf32, #tpu.memory_space<smem>>, %arg4: memref<8x1xf32, #tpu.memory_space<vmem>>) attributes {dimension_semantics = [#tpu.dimension_semantics<parallel>], iteration_bounds = array<i64: 1>, scalar_prefetch = 0 : i64, scratch_operands = 0 : i64, tpu.core_type = #tpu.core_type<tc>, window_params = [{transform_indices = @transform_0, window_bounds = array<i64: 8, 1>}, {transform_indices = @transform_1, window_bounds = array<i64: 1, 1>}, {transform_indices = @transform_2, window_bounds = array<i64: 1, 1>}, {transform_indices = @transform_3, window_bounds = array<i64: 8, 1>}]} {
    %c0 = arith.constant 0 : index
    %c0_0 = arith.constant 0 : index
    %0 = vector.load %arg1[%c0, %c0_0] : memref<8x1xf32, #tpu.memory_space<vmem>>, vector<8x1xf32>
    %c0_1 = arith.constant 0 : index
    %c0_2 = arith.constant 0 : index
    %1 = memref.load %arg2[%c0_1, %c0_2] : memref<1x1xf32, #tpu.memory_space<smem>>
    %2 = vector.broadcast %1 : f32 to vector<8x1xf32>
    %3 = arith.mulf %0, %2 : vector<8x1xf32>
    %c0_3 = arith.constant 0 : index
    %c0_4 = arith.constant 0 : index
    %4 = memref.load %arg3[%c0_3, %c0_4] : memref<1x1xf32, #tpu.memory_space<smem>>
    %5 = vector.broadcast %4 : f32 to vector<8x1xf32>
    %6 = arith.addf %3, %5 : vector<8x1xf32>
    %c0_5 = arith.constant 0 : index
    %c0_6 = arith.constant 0 : index
    %7 = vector.load %arg4[%c0_5, %c0_6] : memref<8x1xf32, #tpu.memory_space<vmem>>, vector<8x1xf32>
    tpu.vector_store %arg4[%c0_5, %c0_6], %6 {strides = array<i32>} : memref<8x1xf32, #tpu.memory_space<vmem>>, vector<8x1xf32>,
    return
  }
  func.func @transform_0(%arg0: i32) -> (i32, i32) {
    %c0_i32 = arith.constant 0 : i32
    %c0_i32_0 = arith.constant 0 : i32
    return %arg0, %c0_i32 : i32, i32
  }
  func.func @transform_1(%arg0: i32) -> (i32, i32) {
    %c0_i32 = arith.constant 0 : i32
    %c0_i32_0 = arith.constant 0 : i32
    %c0_i32_1 = arith.constant 0 : i32
    return %c0_i32, %c0_i32_0 : i32, i32
  }
  func.func @transform_2(%arg0: i32) -> (i32, i32) {
    %c0_i32 = arith.constant 0 : i32
    %c0_i32_0 = arith.constant 0 : i32
    %c0_i32_1 = arith.constant 0 : i32
    return %c0_i32, %c0_i32_0 : i32, i32
  }
  func.func @transform_3(%arg0: i32) -> (i32, i32) {
    %c0_i32 = arith.constant 0 : i32
    %c0_i32_0 = arith.constant 0 : i32
    return %arg0, %c0_i32 : i32, i32
  }
}

</mosaic_0001>

<llo_original>
// kernel: linear_forward.1
$region0: #{linear_forward.1}
  #allocation0 [shape = 'u32[]', space=smem, size = 0x4, offset = 0x4, fixed_abs, tag = 'smem constant byte address 0x4 - core index']
  #allocation1 [shape = 'u32[72,128]{1,0:T(1,128)}', space=vmem, size = 0x9000, scoped, tag = 'internal scratch']
  #allocation2 [shape = 'f32[1,1]{1,0:T(1,128)S(6)}', space=smem, size = 0x200, scoped, tag = 'scoped memory for linear_forward.1']
  #allocation3 [shape = 'f32[1,1]{1,0:T(1,128)S(6)}', space=smem, size = 0x200, scoped, tag = 'scoped memory for linear_forward.1']
  %s0 = inlined_call_operand.vmem [shape: f32[8,1], index: 0, kind: input, shape index: {}]
  %s1 = inlined_call_operand.<no memory space> [shape: f32[1,1], index: 1, kind: input, shape index: {}]
  %s2 = inlined_call_operand.<no memory space> [shape: f32[1,1], index: 2, kind: input, shape index: {}]
  %s3 = inlined_call_operand.vmem [shape: f32[8,1], index: 3, kind: output, shape index: {}]
  %s4 = sld [smem:[#allocation0]]
  $region22: #{linear_forward.1} parent=0
    _
  %s6 = ssub.s32 1, %s4
  %s7 = scalar_select 0, %s6, %s4
  %8 = sst [smem:[#allocation2]] %s1
  %9 = sst [smem:[#allocation3]] %s2
  // Predicated region
  $region2: #{linear_forward.1} parent=0 // pred_check
    _
  $region3: #{linear_forward.1} parent=0 // pred_check_branch
    %11 = sbr.rel (0) target = $region5
  $region4: #{linear_forward.1} parent=0 // pred_region
    _
  $region5: #{linear_forward.1} parent=0 // pred_fallthru
    _
  // Predicated region
  $region6: #{linear_forward.1} parent=0 // pred_check
    _
  $region7: #{linear_forward.1} parent=0 // pred_check_branch
    %13 = sbr.rel (0) target = $region9
  $region8: #{linear_forward.1} parent=0 // pred_region
    _
  $region9: #{linear_forward.1} parent=0 // pred_fallthru
    _
  // Predicated region
  $region10: #{linear_forward.1} parent=0 // pred_check
    _
  $region11: #{linear_forward.1} parent=0 // pred_check_branch
    %15 = sbr.rel (0) target = $region13
  $region12: #{linear_forward.1} parent=0 // pred_region
    _
  $region13: #{linear_forward.1} parent=0 // pred_fallthru
    _
  %v16 = vld [vmem:[%s0] sm:$0xff]
  %s17 = sld [smem:[#allocation2]]
  %v18 = vstv %s17
  %v19 = vmul.f32 %v16, %v18
  %s20 = sld [smem:[#allocation3]]
  %v21 = vstv %s20
  %v22 = vadd.f32 %v19, %v21
  %vm23 = vcmask 7168
  %24 = vst.msk [vmem:[%s3] sm:$0xff] %vm23, %v22
  // Predicated region
  $region14: #{linear_forward.1} parent=0 // pred_check
    _
  $region15: #{linear_forward.1} parent=0 // pred_check_branch
    %26 = sbr.rel (0) target = $region17
  $region16: #{linear_forward.1} parent=0 // pred_region
    _
  $region17: #{linear_forward.1} parent=0 // pred_fallthru
    _
  // Predicated region
  $region18: #{linear_forward.1} parent=0 // pred_check
    _
  $region19: #{linear_forward.1} parent=0 // pred_check_branch
    %28 = sbr.rel (0) target = $region21
  $region20: #{linear_forward.1} parent=0 // pred_region
    _
  $region21: #{linear_forward.1} parent=0 // pred_fallthru
    _

</llo_original>
